<compile_context>
chip_gen: v7x
topology: tpu7x:2x2x1
jax: 0.10.0
libtpu: 0.0.40
codegen_flags: <defaults>
</compile_context>

<pallas_src>
import functools

import jax
import jax.numpy as jnp
from jax.experimental import pallas as pl
from jax.experimental.pallas import tpu as pltpu


def mha_kernel(x_ref, wqkv_ref, bqkv_ref, wp_ref, bp_ref, o_ref,
               *, n_heads, head_dim, compute_dtype):
    bt, n, d = x_ref.shape
    rows = bt * n

    # Flatten the batch block into rows once; cast once to the MXU dtype.
    x_rows = x_ref[...].reshape(rows, d).astype(compute_dtype)          # (R, D)

    head_outs = []
    # Static unroll: n_heads is a small static int (e.g. 12 for ViT); every
    # slice below is static so no dynamic lane slicing is needed.
    # TODO(synk): for very large head counts switch to a pl.loop + VMEM concat
    # scratch so only one (Bt, N, N) score matrix is live at a time.
    for h in range(n_heads):
        # Fused per-head QKV projection: (R, D) @ (D, 3*hd), f32 accumulation.
        # Softmax scale is pre-folded into the q third of weights/bias.
        qkv = jnp.dot(x_rows, wqkv_ref[h],
                      preferred_element_type=jnp.float32) + bqkv_ref[h]  # (R,3hd) f32
        q = qkv[:, :head_dim].reshape(bt, n, head_dim).astype(compute_dtype)
        k = qkv[:, head_dim:2 * head_dim].reshape(bt, n, head_dim).astype(compute_dtype)
        v = qkv[:, 2 * head_dim:].reshape(bt, n, head_dim).astype(compute_dtype)

        # Scores + softmax (f32 elementwise math), batched over the Bt dim.
        s = jnp.einsum('bnk,bmk->bnm', q, k,
                       preferred_element_type=jnp.float32)               # (Bt,N,N)
        s = s - jnp.max(s, axis=-1, keepdims=True)
        e = jnp.exp(s)
        p = e * pl.reciprocal(jnp.sum(e, axis=-1, keepdims=True), approx=True)

        oh = jnp.einsum('bnm,bmk->bnk', p.astype(compute_dtype), v,
                        preferred_element_type=jnp.float32)              # (Bt,N,hd)
        head_outs.append(oh.reshape(rows, head_dim).astype(compute_dtype))

    # Concatenate heads along lanes and run one output-projection matmul with
    # full-depth contraction (K = n_heads*head_dim).
    heads = jnp.concatenate(head_outs, axis=-1)                          # (R, inner)
    out = jnp.dot(heads, wp_ref[...],
                  preferred_element_type=jnp.float32) + bp_ref[...]      # (R, D)
    o_ref[...] = out.reshape(bt, n, d).astype(o_ref.dtype)


def _pick_batch_block(batch, max_bt=8):
    for bt in range(min(batch, max_bt), 0, -1):
        if batch % bt == 0:
            return bt
    return 1


def multi_attention(x, wqkv, bqkv, wproj, bproj, *, n_heads, head_dim,
                    batch_block=None, compute_dtype=jnp.bfloat16):
    """MultiAttention forward. wqkv: (D, 3*inner), wproj: (inner, D)."""
    B, N, D = x.shape
    inner = n_heads * head_dim
    assert wqkv.shape == (D, 3 * inner) and wproj.shape == (inner, D)
    scale = head_dim ** (-0.5)

    bt = batch_block if batch_block is not None else _pick_batch_block(B)
    assert B % bt == 0

    # One-time parameter re-layout outside the kernel:
    #   fused head-major QKV weights (n_heads, D, 3*head_dim) + bias
    #   (n_heads, 1, 3*head_dim), softmax scale folded into the q third.
    wq, wk, wv = jnp.split(wqkv, 3, axis=-1)                             # (D, inner)
    bq, bk, bv = jnp.split(bqkv, 3)                                      # (inner,)
    wq = wq * scale
    bq = bq * scale

    def heads_major(w):        # (D, inner) -> (n_heads, D, head_dim)
        return jnp.transpose(w.reshape(D, n_heads, head_dim), (1, 0, 2))

    wqkv_h = jnp.concatenate(
        [heads_major(wq), heads_major(wk), heads_major(wv)],
        axis=-1).astype(compute_dtype)                                   # (H, D, 3hd)
    bqkv_h = jnp.concatenate(
        [bq.reshape(n_heads, 1, head_dim),
         bk.reshape(n_heads, 1, head_dim),
         bv.reshape(n_heads, 1, head_dim)],
        axis=-1).astype(jnp.float32)                                     # (H, 1, 3hd)
    wp = wproj.astype(compute_dtype)                                     # (inner, D)
    bp = bproj.reshape(1, D).astype(jnp.float32)                         # (1, D)

    kernel = functools.partial(mha_kernel, n_heads=n_heads, head_dim=head_dim,
                               compute_dtype=compute_dtype)
    const2 = lambda b: (0, 0)
    const3 = lambda b: (0, 0, 0)

    # TODO(synk): for a v7x megacore split at large N, add a second parallel
    # grid axis over query-row blocks (needs K/V for the full sequence).
    return pl.pallas_call(
        kernel,
        out_shape=jax.ShapeDtypeStruct((B, N, D), x.dtype),
        grid=(B // bt,),
        in_specs=[
            pl.BlockSpec((bt, N, D), lambda b: (b, 0, 0)),               # x batch block
            pl.BlockSpec((n_heads, D, 3 * head_dim), const3),            # Wqkv (resident)
            pl.BlockSpec((n_heads, 1, 3 * head_dim), const3),            # bqkv
            pl.BlockSpec((inner, D), const2),                            # Wproj
            pl.BlockSpec((1, D), const2),                                # bproj
        ],
        out_specs=pl.BlockSpec((bt, N, D), lambda b: (b, 0, 0)),
        compiler_params=pltpu.CompilerParams(
            dimension_semantics=("parallel",)),
    )(x, wqkv_h, bqkv_h, wp, bp)


def multi_attention_ref(x, wqkv, bqkv, wproj, bproj, *, n_heads, head_dim):
    """Pure-JAX f32 reference matching the PyTorch forward."""
    B, N, D = x.shape
    inner = n_heads * head_dim
    qkv = x @ wqkv + bqkv
    q, k, v = jnp.split(qkv, 3, axis=-1)

    def to_heads(t):
        return t.reshape(B, N, n_heads, head_dim).transpose(0, 2, 1, 3)

    q, k, v = map(to_heads, (q, k, v))
    dots = jnp.einsum("bhnd,bhmd->bhnm", q, k) * (head_dim ** -0.5)
    attn = jax.nn.softmax(dots, axis=-1)
    out = jnp.einsum("bhnm,bhmd->bhnd", attn, v)
    out = out.transpose(0, 2, 1, 3).reshape(B, N, inner)
    return out @ wproj + bproj


if __name__ == "__main__":
    # Small, forward-consistent shapes.
    B, N = 2, 8
    tran_dim = 32
    n_heads, head_dim = 2, 16
    inner = n_heads * head_dim

    key = jax.random.PRNGKey(0)
    kx, k1, k2, k3, k4 = jax.random.split(key, 5)

    x = jax.random.normal(kx, (B, N, tran_dim), dtype=jnp.float32)
    wqkv = jax.random.normal(k1, (tran_dim, 3 * inner), dtype=jnp.float32) * 0.05
    bqkv = jax.random.normal(k2, (3 * inner,), dtype=jnp.float32) * 0.05
    wproj = jax.random.normal(k3, (inner, tran_dim), dtype=jnp.float32) * 0.05
    bproj = jax.random.normal(k4, (tran_dim,), dtype=jnp.float32) * 0.05

    ref = multi_attention_ref(x, wqkv, bqkv, wproj, bproj,
                              n_heads=n_heads, head_dim=head_dim)

    # f32 compute path (tight tolerance; approx reciprocal only difference).
    out_f32 = jax.block_until_ready(multi_attention(
        x, wqkv, bqkv, wproj, bproj, n_heads=n_heads, head_dim=head_dim,
        compute_dtype=jnp.float32))
    assert out_f32.shape == (B, N, tran_dim)
    assert jnp.allclose(out_f32, ref, atol=5e-3, rtol=5e-3), "f32 mismatch vs reference"

    # Default bf16-MXU path (f32 accumulation) — performance configuration.
    out_bf16 = jax.block_until_ready(multi_attention(
        x, wqkv, bqkv, wproj, bproj, n_heads=n_heads, head_dim=head_dim))
    assert out_bf16.shape == (B, N, tran_dim)
    assert jnp.allclose(out_bf16, ref, atol=2e-2, rtol=2e-2), "bf16 mismatch vs reference"

    print("KERNEL_OK")
</pallas_src>

<mosaic_0001>
module attributes {stable_mosaic.version = 11 : i64} {
  func.func @mha_kernel(%arg0: i32, %arg1: memref<2x8x32xf32, #tpu.memory_space<vmem>>, %arg2: memref<2x32x48xf32, #tpu.memory_space<vmem>>, %arg3: memref<2x1x48xf32, #tpu.memory_space<vmem>>, %arg4: memref<32x32xf32, #tpu.memory_space<vmem>>, %arg5: memref<1x32xf32, #tpu.memory_space<vmem>>, %arg6: memref<2x8x32xf32, #tpu.memory_space<vmem>>) attributes {dimension_semantics = [#tpu.dimension_semantics<parallel>], iteration_bounds = array<i64: 1>, scalar_prefetch = 0 : i64, scratch_operands = 0 : i64, tpu.core_type = #tpu.core_type<tc>, window_params = [{transform_indices = @transform_0, window_bounds = array<i64: 2, 8, 32>}, {pipeline_mode = #tpu.pipeline_mode<synchronous>, transform_indices = @transform_1, window_bounds = array<i64: 2, 32, 48>}, {pipeline_mode = #tpu.pipeline_mode<synchronous>, transform_indices = @transform_2, window_bounds = array<i64: 2, 1, 48>}, {pipeline_mode = #tpu.pipeline_mode<synchronous>, transform_indices = @transform_3, window_bounds = array<i64: 32, 32>}, {pipeline_mode = #tpu.pipeline_mode<synchronous>, transform_indices = @transform_4, window_bounds = array<i64: 1, 32>}, {transform_indices = @transform_5, window_bounds = array<i64: 2, 8, 32>}]} {
    %c0 = arith.constant 0 : index
    %c0_0 = arith.constant 0 : index
    %c0_1 = arith.constant 0 : index
    %0 = vector.load %arg1[%c0, %c0_0, %c0_1] : memref<2x8x32xf32, #tpu.memory_space<vmem>>, vector<2x8x32xf32>
    %1 = vector.shape_cast %0 : vector<2x8x32xf32> to vector<16x32xf32>
    %c0_2 = arith.constant 0 : index
    %c0_3 = arith.constant 0 : index
    %c0_4 = arith.constant 0 : index
    %2 = vector.load %arg2[%c0_2, %c0_3, %c0_4] : memref<2x32x48xf32, #tpu.memory_space<vmem>>, vector<1x32x48xf32>
    %3 = vector.shape_cast %2 : vector<1x32x48xf32> to vector<32x48xf32>
    %cst = arith.constant dense<0.000000e+00> : vector<16x48xf32>
    %4 = tpu.matmul %1, %3, %cst {dimension_numbers = #tpu.dot_dimension_numbers<[1], [0], [0], [1], [0, 0, 1, 1], [], []>} : vector<16x32xf32>, vector<32x48xf32>, vector<16x48xf32> -> vector<16x48xf32>
    %c0_5 = arith.constant 0 : index
    %c0_6 = arith.constant 0 : index
    %c0_7 = arith.constant 0 : index
    %5 = vector.load %arg3[%c0_5, %c0_6, %c0_7] : memref<2x1x48xf32, #tpu.memory_space<vmem>>, vector<1x1x48xf32>
    %6 = vector.shape_cast %5 : vector<1x1x48xf32> to vector<1x48xf32>
    %7 = vector.broadcast %6 : vector<1x48xf32> to vector<16x48xf32>
    %8 = arith.addf %4, %7 : vector<16x48xf32>
    %9 = vector.extract_strided_slice %8 {offsets = [0, 0], sizes = [16, 16], strides = [1, 1]} : vector<16x48xf32> to vector<16x16xf32>
    %10 = vector.shape_cast %9 : vector<16x16xf32> to vector<2x8x16xf32>
    %11 = vector.extract_strided_slice %8 {offsets = [0, 16], sizes = [16, 16], strides = [1, 1]} : vector<16x48xf32> to vector<16x16xf32>
    %12 = vector.shape_cast %11 : vector<16x16xf32> to vector<2x8x16xf32>
    %13 = vector.extract_strided_slice %8 {offsets = [0, 32], sizes = [16, 16], strides = [1, 1]} : vector<16x48xf32> to vector<16x16xf32>
    %14 = vector.shape_cast %13 : vector<16x16xf32> to vector<2x8x16xf32>
    "tpu.trace_start"() <{level = 10 : i32, message = "bnk,bmk->bnm"}> : () -> ()
    %cst_8 = arith.constant dense<0.000000e+00> : vector<2x8x8xf32>
    %15 = tpu.matmul %10, %12, %cst_8 {dimension_numbers = #tpu.dot_dimension_numbers<[2], [2], [1], [1], [0, 0, 0, 1, 1, 1], [0], [0]>} : vector<2x8x16xf32>, vector<2x8x16xf32>, vector<2x8x8xf32> -> vector<2x8x8xf32>
    "tpu.trace_stop"() : () -> ()
    %cst_9 = arith.constant dense<0xFF800000> : vector<2x8xf32>
    %16 = vector.multi_reduction <maximumf>, %15, %cst_9 [2] : vector<2x8x8xf32> to vector<2x8xf32>
    %17 = vector.shape_cast %16 : vector<2x8xf32> to vector<2x8x1xf32>
    %18 = vector.broadcast %17 : vector<2x8x1xf32> to vector<2x8x8xf32>
    %19 = arith.subf %15, %18 : vector<2x8x8xf32>
    %20 = math.exp %19 : vector<2x8x8xf32>
    %cst_10 = arith.constant dense<0.000000e+00> : vector<2x8xf32>
    %21 = vector.multi_reduction <add>, %20, %cst_10 [2] : vector<2x8x8xf32> to vector<2x8xf32>
    %22 = vector.shape_cast %21 : vector<2x8xf32> to vector<2x8x1xf32>
    %23 = tpu.reciprocal %22 {approx = true} : vector<2x8x1xf32> -> vector<2x8x1xf32>
    %24 = vector.broadcast %23 : vector<2x8x1xf32> to vector<2x8x8xf32>
    %25 = arith.mulf %20, %24 : vector<2x8x8xf32>
    "tpu.trace_start"() <{level = 10 : i32, message = "bnm,bmk->bnk"}> : () -> ()
    %cst_11 = arith.constant dense<0.000000e+00> : vector<2x8x16xf32>
    %26 = tpu.matmul %25, %14, %cst_11 {dimension_numbers = #tpu.dot_dimension_numbers<[2], [1], [1], [2], [0, 0, 0, 1, 1, 2], [0], [0]>} : vector<2x8x8xf32>, vector<2x8x16xf32>, vector<2x8x16xf32> -> vector<2x8x16xf32>
    "tpu.trace_stop"() : () -> ()
    %27 = vector.shape_cast %26 : vector<2x8x16xf32> to vector<16x16xf32>
    %c1 = arith.constant 1 : index
    %c0_12 = arith.constant 0 : index
    %c0_13 = arith.constant 0 : index
    %28 = vector.load %arg2[%c1, %c0_12, %c0_13] : memref<2x32x48xf32, #tpu.memory_space<vmem>>, vector<1x32x48xf32>
    %29 = vector.shape_cast %28 : vector<1x32x48xf32> to vector<32x48xf32>
    %cst_14 = arith.constant dense<0.000000e+00> : vector<16x48xf32>
    %30 = tpu.matmul %1, %29, %cst_14 {dimension_numbers = #tpu.dot_dimension_numbers<[1], [0], [0], [1], [0, 0, 1, 1], [], []>} : vector<16x32xf32>, vector<32x48xf32>, vector<16x48xf32> -> vector<16x48xf32>
    %c1_15 = arith.constant 1 : index
    %c0_16 = arith.constant 0 : index
    %c0_17 = arith.constant 0 : index
    %31 = vector.load %arg3[%c1_15, %c0_16, %c0_17] : memref<2x1x48xf32, #tpu.memory_space<vmem>>, vector<1x1x48xf32>
    %32 = vector.shape_cast %31 : vector<1x1x48xf32> to vector<1x48xf32>
    %33 = vector.broadcast %32 : vector<1x48xf32> to vector<16x48xf32>
    %34 = arith.addf %30, %33 : vector<16x48xf32>
    %35 = vector.extract_strided_slice %34 {offsets = [0, 0], sizes = [16, 16], strides = [1, 1]} : vector<16x48xf32> to vector<16x16xf32>
    %36 = vector.shape_cast %35 : vector<16x16xf32> to vector<2x8x16xf32>
    %37 = vector.extract_strided_slice %34 {offsets = [0, 16], sizes = [16, 16], strides = [1, 1]} : vector<16x48xf32> to vector<16x16xf32>
    %38 = vector.shape_cast %37 : vector<16x16xf32> to vector<2x8x16xf32>
    %39 = vector.extract_strided_slice %34 {offsets = [0, 32], sizes = [16, 16], strides = [1, 1]} : vector<16x48xf32> to vector<16x16xf32>
    %40 = vector.shape_cast %39 : vector<16x16xf32> to vector<2x8x16xf32>
    "tpu.trace_start"() <{level = 10 : i32, message = "bnk,bmk->bnm"}> : () -> ()
    %cst_18 = arith.constant dense<0.000000e+00> : vector<2x8x8xf32>
    %41 = tpu.matmul %36, %38, %cst_18 {dimension_numbers = #tpu.dot_dimension_numbers<[2], [2], [1], [1], [0, 0, 0, 1, 1, 1], [0], [0]>} : vector<2x8x16xf32>, vector<2x8x16xf32>, vector<2x8x8xf32> -> vector<2x8x8xf32>
    "tpu.trace_stop"() : () -> ()
    %cst_19 = arith.constant dense<0xFF800000> : vector<2x8xf32>
    %42 = vector.multi_reduction <maximumf>, %41, %cst_19 [2] : vector<2x8x8xf32> to vector<2x8xf32>
    %43 = vector.shape_cast %42 : vector<2x8xf32> to vector<2x8x1xf32>
    %44 = vector.broadcast %43 : vector<2x8x1xf32> to vector<2x8x8xf32>
    %45 = arith.subf %41, %44 : vector<2x8x8xf32>
    %46 = math.exp %45 : vector<2x8x8xf32>
    %cst_20 = arith.constant dense<0.000000e+00> : vector<2x8xf32>
    %47 = vector.multi_reduction <add>, %46, %cst_20 [2] : vector<2x8x8xf32> to vector<2x8xf32>
    %48 = vector.shape_cast %47 : vector<2x8xf32> to vector<2x8x1xf32>
    %49 = tpu.reciprocal %48 {approx = true} : vector<2x8x1xf32> -> vector<2x8x1xf32>
    %50 = vector.broadcast %49 : vector<2x8x1xf32> to vector<2x8x8xf32>
    %51 = arith.mulf %46, %50 : vector<2x8x8xf32>
    "tpu.trace_start"() <{level = 10 : i32, message = "bnm,bmk->bnk"}> : () -> ()
    %cst_21 = arith.constant dense<0.000000e+00> : vector<2x8x16xf32>
    %52 = tpu.matmul %51, %40, %cst_21 {dimension_numbers = #tpu.dot_dimension_numbers<[2], [1], [1], [2], [0, 0, 0, 1, 1, 2], [0], [0]>} : vector<2x8x8xf32>, vector<2x8x16xf32>, vector<2x8x16xf32> -> vector<2x8x16xf32>
    "tpu.trace_stop"() : () -> ()
    %53 = vector.shape_cast %52 : vector<2x8x16xf32> to vector<16x16xf32>
    %54 = tpu.concatenate %27, %53 in 1 : vector<16x16xf32>, vector<16x16xf32> -> vector<16x32xf32>
    %c0_22 = arith.constant 0 : index
    %c0_23 = arith.constant 0 : index
    %55 = vector.load %arg4[%c0_22, %c0_23] : memref<32x32xf32, #tpu.memory_space<vmem>>, vector<32x32xf32>
    %cst_24 = arith.constant dense<0.000000e+00> : vector<16x32xf32>
    %56 = tpu.matmul %54, %55, %cst_24 {dimension_numbers = #tpu.dot_dimension_numbers<[1], [0], [0], [1], [0, 0, 1, 1], [], []>} : vector<16x32xf32>, vector<32x32xf32>, vector<16x32xf32> -> vector<16x32xf32>
    %c0_25 = arith.constant 0 : index
    %c0_26 = arith.constant 0 : index
    %57 = vector.load %arg5[%c0_25, %c0_26] : memref<1x32xf32, #tpu.memory_space<vmem>>, vector<1x32xf32>
    %58 = vector.broadcast %57 : vector<1x32xf32> to vector<16x32xf32>
    %59 = arith.addf %56, %58 : vector<16x32xf32>
    %60 = vector.shape_cast %59 : vector<16x32xf32> to vector<2x8x32xf32>
    %c0_27 = arith.constant 0 : index
    %c0_28 = arith.constant 0 : index
    %c0_29 = arith.constant 0 : index
    %61 = vector.load %arg6[%c0_27, %c0_28, %c0_29] : memref<2x8x32xf32, #tpu.memory_space<vmem>>, vector<2x8x32xf32>
    tpu.vector_store %arg6[%c0_27, %c0_28, %c0_29], %60 {strides = array<i32>} : memref<2x8x32xf32, #tpu.memory_space<vmem>>, vector<2x8x32xf32>,
    return
  }
  func.func @transform_0(%arg0: i32) -> (i32, i32, i32) {
    %c0_i32 = arith.constant 0 : i32
    %c0_i32_0 = arith.constant 0 : i32
    %c0_i32_1 = arith.constant 0 : i32
    return %arg0, %c0_i32, %c0_i32_0 : i32, i32, i32
  }
  func.func @transform_1(%arg0: i32) -> (i32, i32, i32) {
    %c0_i32 = arith.constant 0 : i32
    %c0_i32_0 = arith.constant 0 : i32
    %c0_i32_1 = arith.constant 0 : i32
    %c0_i32_2 = arith.constant 0 : i32
    return %c0_i32, %c0_i32_0, %c0_i32_1 : i32, i32, i32
  }
  func.func @transform_2(%arg0: i32) -> (i32, i32, i32) {
    %c0_i32 = arith.constant 0 : i32
    %c0_i32_0 = arith.constant 0 : i32
    %c0_i32_1 = arith.constant 0 : i32
    %c0_i32_2 = arith.constant 0 : i32
    return %c0_i32, %c0_i32_0, %c0_i32_1 : i32, i32, i32
  }
  func.func @transform_3(%arg0: i32) -> (i32, i32) {
    %c0_i32 = arith.constant 0 : i32
    %c0_i32_0 = arith.constant 0 : i32
    %c0_i32_1 = arith.constant 0 : i32
    return %c0_i32, %c0_i32_0 : i32, i32
  }
  func.func @transform_4(%arg0: i32) -> (i32, i32) {
    %c0_i32 = arith.constant 0 : i32
    %c0_i32_0 = arith.constant 0 : i32
    %c0_i32_1 = arith.constant 0 : i32
    return %c0_i32, %c0_i32_0 : i32, i32
  }
  func.func @transform_5(%arg0: i32) -> (i32, i32, i32) {
    %c0_i32 = arith.constant 0 : i32
    %c0_i32_0 = arith.constant 0 : i32
    %c0_i32_1 = arith.constant 0 : i32
    return %arg0, %c0_i32, %c0_i32_0 : i32, i32, i32
  }
}

</mosaic_0001>

<llo_original>
// kernel: tpu_custom_call.1
$region0: #{tpu_custom_call.1}
  #allocation0 [shape = 'u32[]', space=smem, size = 0x4, offset = 0x4, fixed_abs, tag = 'smem constant byte address 0x4 - core index']
  #allocation1 [shape = 'u32[144,128]{1,0:T(1,128)}', space=vmem, size = 0x12000, scoped, tag = 'internal scratch']
  %s0 = inlined_call_operand.hbm [shape: f32[2,8,32], index: 0, kind: input, shape index: {}]
  %s1 = inlined_call_operand.hbm [shape: f32[2,32,48], index: 1, kind: input, shape index: {}]
  %s2 = inlined_call_operand.vmem [shape: f32[2,1,48], index: 2, kind: input, shape index: {}]
  %s3 = inlined_call_operand.hbm [shape: f32[32,32], index: 3, kind: input, shape index: {}]
  %s4 = inlined_call_operand.vmem [shape: f32[1,32], index: 4, kind: input, shape index: {}]
  %s5 = inlined_call_operand.hbm [shape: f32[2,8,32], index: 5, kind: output, shape index: {}]
  %s6 = sld [smem:[#allocation0]]
  $region42: #{tpu_custom_call.1} parent=0
    _
  %s8 = ssub.s32 1, %s6
  %s9 = scalar_select 0, %s8, %s6
  $region1: #{tpu_custom_call.1} parent=0
    #allocation2 [shape = 'u8[8192]{0}', space=vmem, size = 0x2000, scoped, tag = 'input window, operand 0, single buffered']
    #allocation3 [shape = 's32[1]{0}', space=sflag, size = 0x4, scoped, tag = 'scoped memory for tpu_custom_call.1']
    #allocation4 [shape = 's32[1]{0}', space=sflag, size = 0x4, scoped, tag = 'scoped memory for tpu_custom_call.1']
    #allocation5 [shape = 'u8[32768]{0}', space=vmem, size = 0x8000, scoped, tag = 'input window, operand 1, single buffered']
    #allocation6 [shape = 's32[1]{0}', space=sflag, size = 0x4, scoped, tag = 'scoped memory for tpu_custom_call.1']
    #allocation7 [shape = 'u8[16384]{0}', space=vmem, size = 0x4000, scoped, tag = 'input window, operand 3, single buffered']
    #allocation8 [shape = 'u8[8192]{0}', space=vmem, size = 0x2000, scoped, tag = 'output window, operand 0, single buffered']
    %10 = vsyncpa [#allocation3], 0
    %11 = vsyncpa [#allocation6], 0
    %12 = vsyncpa [#allocation4], 0
    // Predicated region
    $region2: #{tpu_custom_call.1} parent=1 // pred_check
      _
    $region3: #{tpu_custom_call.1} parent=1 // pred_check_branch
      %14 = sbr.rel (0) target = $region5
    $region4: #{tpu_custom_call.1} parent=1 // pred_region
      %s16 = ssub.s32 256, 256
      %17 = vsyncadd [#allocation3], %s16
      %s18 = sshll.u32 [#allocation2], 4
      %s19 = int_to_ptr.vmem [resolvable:$true] %s18
      %24 = dma.hbm_to_vmem [thread:$0]  %s0, 256, %s19, [#allocation3], 128, 128, 8
    $region5: #{tpu_custom_call.1} parent=1 // pred_fallthru
      _
    // Predicated region
    $region6: #{tpu_custom_call.1} parent=1 // pred_check
      _
    $region7: #{tpu_custom_call.1} parent=1 // pred_check_branch
      %26 = sbr.rel (0) target = $region9
    $region8: #{tpu_custom_call.1} parent=1 // pred_region
      %s28 = ssub.s32 1024, 1024
      %29 = vsyncadd [#allocation6], %s28
      %s30 = sshll.u32 [#allocation5], 4
      %s31 = int_to_ptr.vmem [resolvable:$true] %s30
      %36 = dma.hbm_to_vmem [thread:$0]  %s1, 1024, %s31, [#allocation6], 128, 128, 8
    $region9: #{tpu_custom_call.1} parent=1 // pred_fallthru
      _
    // Predicated region
    $region10: #{tpu_custom_call.1} parent=1 // pred_check
      _
    $region11: #{tpu_custom_call.1} parent=1 // pred_check_branch
      %38 = sbr.rel (0) target = $region13
    $region12: #{tpu_custom_call.1} parent=1 // pred_region
      _
    $region13: #{tpu_custom_call.1} parent=1 // pred_fallthru
      _
    // Predicated region
    $region14: #{tpu_custom_call.1} parent=1 // pred_check
      _
    $region15: #{tpu_custom_call.1} parent=1 // pred_check_branch
      %40 = sbr.rel (0) target = $region17
    $region16: #{tpu_custom_call.1} parent=1 // pred_region
      %s42 = ssub.s32 512, 512
      %43 = vsyncadd [#allocation6], %s42
      %s44 = sshll.u32 [#allocation7], 4
      %s45 = int_to_ptr.vmem [resolvable:$true] %s44
      %50 = dma.hbm_to_vmem [thread:$0]  %s3, 512, %s45, [#allocation6], 128, 128, 8
    $region17: #{tpu_custom_call.1} parent=1 // pred_fallthru
      _
    // Predicated region
    $region18: #{tpu_custom_call.1} parent=1 // pred_check
      _
    $region19: #{tpu_custom_call.1} parent=1 // pred_check_branch
      %52 = sbr.rel (0) target = $region21
    $region20: #{tpu_custom_call.1} parent=1 // pred_region
      _
    $region21: #{tpu_custom_call.1} parent=1 // pred_fallthru
      _
    // Predicated region
    $region22: #{tpu_custom_call.1} parent=1 // pred_check
      _
    $region23: #{tpu_custom_call.1} parent=1 // pred_check_branch
      %54 = sbr.rel (0) target = $region25
    $region24: #{tpu_custom_call.1} parent=1 // pred_region
      %55 = dma.done [#allocation3], 256
    $region25: #{tpu_custom_call.1} parent=1 // pred_fallthru
      _
    // Predicated region
    $region26: #{tpu_custom_call.1} parent=1 // pred_check
      _
    $region27: #{tpu_custom_call.1} parent=1 // pred_check_branch
      %57 = sbr.rel (0) target = $region29
    $region28: #{tpu_custom_call.1} parent=1 // pred_region
      %58 = dma.done [#allocation6], 1024
    $region29: #{tpu_custom_call.1} parent=1 // pred_fallthru
      _
    // Predicated region
    $region30: #{tpu_custom_call.1} parent=1 // pred_check
      _
    $region31: #{tpu_custom_call.1} parent=1 // pred_check_branch
      %60 = sbr.rel (0) target = $region33
    $region32: #{tpu_custom_call.1} parent=1 // pred_region
      %61 = dma.done [#allocation6], 512
    $region33: #{tpu_custom_call.1} parent=1 // pred_fallthru
      _
    %v62 = vld [vmem:[#allocation2] sm:$0xff]
    %v63 = vld [vmem:[#allocation2 + $0x8] sm:$0xff]
    %v64 = vld [vmem:[#allocation5] sm:$0xff]
    %v65 = vld [vmem:[#allocation5 + $0x8] sm:$0xff]
    %v66 = vld [vmem:[#allocation5 + $0x10] sm:$0xff]
    %v67 = vld [vmem:[#allocation5 + $0x18] sm:$0xff]
    %v68 = vld [vmem:[%s2] sm:$0x1]
    %v70 = vlaneseq
    %v71 = vshrl.u32 %v70, 7
    %v72 = vsub.s32 0, %v71
    %v73 = vrot.slane %v68, %v72
    %vm75 = vcmask 261120
    %v77 = vsel %vm75, %v62, 0
    %v80 = vsel %vm75, %v63, 0
    %82 = vmatprep.subr.mxu0 0.0
    %83 = vmatpush1.msra.mxu0 %v64
    %84 = vmatprep.subr.mxu0 0.0
    %85 = vmatpush1.msra.mxu0 %v65
    %86 = vmatprep.subr.mxu0 0.0
    %87 = vmatpush1.msra.mxu0 %v66
    %88 = vmatprep.subr.mxu0 0.0
    %89 = vmatpush1.msra.mxu0 %v67
    %90 = vmatprep.subr.mxu0 0.0
    %91 = vmatpush1.msra.mxu0 0.0
    %92 = vmatprep.subr.mxu0 0.0
    %93 = vmatpush1.msra.mxu0 0.0
    %94 = vmatprep.subr.mxu0 0.0
    %95 = vmatpush1.msra.mxu0 0.0
    %96 = vmatprep.subr.mxu0 0.0
    %97 = vmatpush1.msra.mxu0 0.0
    %98 = vmatprep.subr.mxu0 0.0
    %99 = vmatpush1.msra.mxu0 0.0
    %100 = vmatprep.subr.mxu0 0.0
    %101 = vmatpush1.msra.mxu0 0.0
    %102 = vmatprep.subr.mxu0 0.0
    %103 = vmatpush1.msra.mxu0 0.0
    %104 = vmatprep.subr.mxu0 0.0
    %105 = vmatpush1.msra.mxu0 0.0
    %106 = vmatprep.subr.mxu0 0.0
    %107 = vmatpush1.msra.mxu0 0.0
    %108 = vmatprep.subr.mxu0 0.0
    %109 = vmatpush1.msra.mxu0 0.0
    %110 = vmatprep.subr.mxu0 0.0
    %111 = vmatpush1.msra.mxu0 0.0
    %112 = vmatprep.subr.mxu0 0.0
    %113 = vmatpush1.msra.mxu0 0.0
    %114 = vmatprep.subr.mxu0 0.0
    %115 = vmatpush1.msra.mxu0 0.0
    %116 = vmatprep.subr.mxu0 0.0
    %117 = vmatpush1.msra.mxu0 0.0
    %118 = vmatprep.subr.mxu0 0.0
    %119 = vmatpush1.msra.mxu0 0.0
    %120 = vmatprep.subr.mxu0 0.0
    %121 = vmatpush1.msra.mxu0 0.0
    %122 = vmatprep.subr.mxu0 0.0
    %123 = vmatpush1.msra.mxu0 0.0
    %124 = vmatprep.subr.mxu0 0.0
    %125 = vmatpush1.msra.mxu0 0.0
    %126 = vmatprep.subr.mxu0 0.0
    %127 = vmatpush1.msra.mxu0 0.0
    %128 = vmatprep.subr.mxu0 0.0
    %129 = vmatpush1.msra.mxu0 0.0
    %130 = vmatprep.subr.mxu0 0.0
    %131 = vmatpush1.msra.mxu0 0.0
    %132 = vmatprep.subr.mxu0 0.0
    %133 = vmatpush1.msra.mxu0 0.0
    %134 = vmatprep.subr.mxu0 0.0
    %135 = vmatpush1.msra.mxu0 0.0
    %136 = vmatprep.subr.mxu0 0.0
    %137 = vmatpush1.msra.mxu0 0.0
    %138 = vmatprep.subr.mxu0 0.0
    %139 = vmatpush1.msra.mxu0 0.0
    %140 = vmatprep.subr.mxu0 0.0
    %141 = vmatpush1.msra.mxu0 0.0
    %142 = vmatprep.subr.mxu0 0.0
    %143 = vmatpush1.msra.mxu0 0.0
    %144 = vmatprep.subr.mxu0 0.0
    %145 = vmatpush1.msra.mxu0 0.0
    %146 = vmatprep.mubr.f32.mxu0 0.0
    %147 = vmatmul.mubr.f32.gmra.mrb[0].mxu0 %v77
    %v148 = vpop.f32.mrb[0].mxu0
    %v149 = vadd.f32 %v73, %v148
    %v150 = vpop.f32.mrb[0].mxu0
    %151 = vmatprep.mubr.f32.mxu0 0.0
    %152 = vmatmul.mubr.f32.gmra.mrb[0].mxu0 %v80
    %v153 = vpop.f32.mrb[0].mxu0
    %v154 = vadd.f32 %v73, %v153
    %v155 = vpop.f32.mrb[0].mxu0
    %156 = vdwg.mxu0
    %158 = vrot.lane.b32.xlu0 %v149, 112
    %v159 = vpop.permute.xlu0 %158
    %vm160 = vcmask 130048
    %v161 = vsel %vm160, %v149, 0
    %v163 = vsel %vm160, %v159, 0
    %165 = vmatprep.subr.mxu0 0.0
    %166 = vmatpush1.xpose.msra.mxu0 %v163
    %167 = vmatprep.subr.mxu0 0.0
    %168 = vmatpush1.xpose.msra.mxu0 0.0
    %169 = vmatprep.subr.mxu0 0.0
    %170 = vmatpush1.xpose.msra.mxu0 0.0
    %171 = vmatprep.subr.mxu0 0.0
    %172 = vmatpush1.xpose.msra.mxu0 0.0
    %173 = vmatprep.subr.mxu0 0.0
    %174 = vmatpush1.xpose.msra.mxu0 0.0
    %175 = vmatprep.subr.mxu0 0.0
    %176 = vmatpush1.xpose.msra.mxu0 0.0
    %177 = vmatprep.subr.mxu0 0.0
    %178 = vmatpush1.xpose.msra.mxu0 0.0
    %179 = vmatprep.subr.mxu0 0.0
    %180 = vmatpush1.xpose.msra.mxu0 0.0
    %181 = vmatprep.subr.mxu0 0.0
    %182 = vmatpush1.xpose.msra.mxu0 0.0
    %183 = vmatprep.subr.mxu0 0.0
    %184 = vmatpush1.xpose.msra.mxu0 0.0
    %185 = vmatprep.subr.mxu0 0.0
    %186 = vmatpush1.xpose.msra.mxu0 0.0
    %187 = vmatprep.subr.mxu0 0.0
    %188 = vmatpush1.xpose.msra.mxu0 0.0
    %189 = vmatprep.subr.mxu0 0.0
    %190 = vmatpush1.xpose.msra.mxu0 0.0
    %191 = vmatprep.subr.mxu0 0.0
    %192 = vmatpush1.xpose.msra.mxu0 0.0
    %193 = vmatprep.subr.mxu0 0.0
    %194 = vmatpush1.xpose.msra.mxu0 0.0
    %195 = vmatprep.subr.mxu0 0.0
    %196 = vmatpush1.xpose.msra.mxu0 0.0
    %197 = vmatprep.subr.mxu0 0.0
    %198 = vmatpush1.xpose.msra.mxu0 0.0
    %199 = vmatprep.subr.mxu0 0.0
    %200 = vmatpush1.xpose.msra.mxu0 0.0
    %201 = vmatprep.subr.mxu0 0.0
    %202 = vmatpush1.xpose.msra.mxu0 0.0
    %203 = vmatprep.subr.mxu0 0.0
    %204 = vmatpush1.xpose.msra.mxu0 0.0
    %205 = vmatprep.subr.mxu0 0.0
    %206 = vmatpush1.xpose.msra.mxu0 0.0
    %207 = vmatprep.subr.mxu0 0.0
    %208 = vmatpush1.xpose.msra.mxu0 0.0
    %209 = vmatprep.subr.mxu0 0.0
    %210 = vmatpush1.xpose.msra.mxu0 0.0
    %211 = vmatprep.subr.mxu0 0.0
    %212 = vmatpush1.xpose.msra.mxu0 0.0
    %213 = vmatprep.subr.mxu0 0.0
    %214 = vmatpush1.xpose.msra.mxu0 0.0
    %215 = vmatprep.subr.mxu0 0.0
    %216 = vmatpush1.xpose.msra.mxu0 0.0
    %217 = vmatprep.subr.mxu0 0.0
    %218 = vmatpush1.xpose.msra.mxu0 0.0
    %219 = vmatprep.subr.mxu0 0.0
    %220 = vmatpush1.xpose.msra.mxu0 0.0
    %221 = vmatprep.subr.mxu0 0.0
    %222 = vmatpush1.xpose.msra.mxu0 0.0
    %223 = vmatprep.subr.mxu0 0.0
    %224 = vmatpush1.xpose.msra.mxu0 0.0
    %225 = vmatprep.subr.mxu0 0.0
    %226 = vmatpush1.xpose.msra.mxu0 0.0
    %227 = vmatprep.subr.mxu0 0.0
    %228 = vmatpush1.xpose.msra.mxu0 0.0
    %229 = vmatprep.mubr.f32.mxu0 0.0
    %230 = vmatmul.mubr.f32.gmra.mrb[0].mxu0 %v161
    %v231 = vpop.f32.mrb[0].mxu0
    %v232 = vadd.f32 0.0, %v231
    %v233 = vpop.f32.mrb[0].mxu0
    %234 = vdwg.mxu0
    %236 = vrot.lane.b32.xlu0 %v154, 112
    %v237 = vpop.permute.xlu0 %236
    %v238 = vsel %vm160, %v154, 0
    %v240 = vsel %vm160, %v237, 0
    %242 = vmatprep.subr.mxu0 0.0
    %243 = vmatpush1.xpose.msra.mxu0 %v240
    %244 = vmatprep.subr.mxu0 0.0
    %245 = vmatpush1.xpose.msra.mxu0 0.0
    %246 = vmatprep.subr.mxu0 0.0
    %247 = vmatpush1.xpose.msra.mxu0 0.0
    %248 = vmatprep.subr.mxu0 0.0
    %249 = vmatpush1.xpose.msra.mxu0 0.0
    %250 = vmatprep.subr.mxu0 0.0
    %251 = vmatpush1.xpose.msra.mxu0 0.0
    %252 = vmatprep.subr.mxu0 0.0
    %253 = vmatpush1.xpose.msra.mxu0 0.0
    %254 = vmatprep.subr.mxu0 0.0
    %255 = vmatpush1.xpose.msra.mxu0 0.0
    %256 = vmatprep.subr.mxu0 0.0
    %257 = vmatpush1.xpose.msra.mxu0 0.0
    %258 = vmatprep.subr.mxu0 0.0
    %259 = vmatpush1.xpose.msra.mxu0 0.0
    %260 = vmatprep.subr.mxu0 0.0
    %261 = vmatpush1.xpose.msra.mxu0 0.0
    %262 = vmatprep.subr.mxu0 0.0
    %263 = vmatpush1.xpose.msra.mxu0 0.0
    %264 = vmatprep.subr.mxu0 0.0
    %265 = vmatpush1.xpose.msra.mxu0 0.0
    %266 = vmatprep.subr.mxu0 0.0
    %267 = vmatpush1.xpose.msra.mxu0 0.0
    %268 = vmatprep.subr.mxu0 0.0
    %269 = vmatpush1.xpose.msra.mxu0 0.0
    %270 = vmatprep.subr.mxu0 0.0
    %271 = vmatpush1.xpose.msra.mxu0 0.0
    %272 = vmatprep.subr.mxu0 0.0
    %273 = vmatpush1.xpose.msra.mxu0 0.0
    %274 = vmatprep.subr.mxu0 0.0
    %275 = vmatpush1.xpose.msra.mxu0 0.0
    %276 = vmatprep.subr.mxu0 0.0
    %277 = vmatpush1.xpose.msra.mxu0 0.0
    %278 = vmatprep.subr.mxu0 0.0
    %279 = vmatpush1.xpose.msra.mxu0 0.0
    %280 = vmatprep.subr.mxu0 0.0
    %281 = vmatpush1.xpose.msra.mxu0 0.0
    %282 = vmatprep.subr.mxu0 0.0
    %283 = vmatpush1.xpose.msra.mxu0 0.0
    %284 = vmatprep.subr.mxu0 0.0
    %285 = vmatpush1.xpose.msra.mxu0 0.0
    %286 = vmatprep.subr.mxu0 0.0
    %287 = vmatpush1.xpose.msra.mxu0 0.0
    %288 = vmatprep.subr.mxu0 0.0
    %289 = vmatpush1.xpose.msra.mxu0 0.0
    %290 = vmatprep.subr.mxu0 0.0
    %291 = vmatpush1.xpose.msra.mxu0 0.0
    %292 = vmatprep.subr.mxu0 0.0
    %293 = vmatpush1.xpose.msra.mxu0 0.0
    %294 = vmatprep.subr.mxu0 0.0
    %295 = vmatpush1.xpose.msra.mxu0 0.0
    %296 = vmatprep.subr.mxu0 0.0
    %297 = vmatpush1.xpose.msra.mxu0 0.0
    %298 = vmatprep.subr.mxu0 0.0
    %299 = vmatpush1.xpose.msra.mxu0 0.0
    %300 = vmatprep.subr.mxu0 0.0
    %301 = vmatpush1.xpose.msra.mxu0 0.0
    %302 = vmatprep.subr.mxu0 0.0
    %303 = vmatpush1.xpose.msra.mxu0 0.0
    %304 = vmatprep.subr.mxu0 0.0
    %305 = vmatpush1.xpose.msra.mxu0 0.0
    %306 = vmatprep.mubr.f32.mxu0 0.0
    %307 = vmatmul.mubr.f32.gmra.mrb[0].mxu0 %v238
    %v308 = vpop.f32.mrb[0].mxu0
    %v309 = vadd.f32 0.0, %v308
    %v310 = vpop.f32.mrb[0].mxu0
    %311 = vdwg.mxu0
    %vm312 = vcmask 64512
    %v313 = vsel %vm312, %v232, -inf
    %314 = vmax.xlane.f32.xlu0 %v313
    %v315 = vpop.xlane.xlu0 %314
    %v316 = vsel %vm312, %v309, -inf
    %317 = vmax.xlane.f32.xlu0 %v316
    %v318 = vpop.xlane.xlu0 %317
    %v319 = vsub.f32 %v232, %v315
    %v320 = vsub.f32 %v309, %v318
    %v321 = vmul.f32 %v319, 1.442695
    %v322 = vpow.pop %v321
    %v323 = vmul.f32 %v320, 1.442695
    %v324 = vpow.pop %v323
    %v325 = vsel %vm312, %v322, 0.0
    %326 = vadd.xlane.f32.xlu0 %v325
    %v327 = vpop.xlane.xlu0 %326
    %v328 = vsel %vm312, %v324, 0.0
    %329 = vadd.xlane.f32.xlu0 %v328
    %v330 = vpop.xlane.xlu0 %329
    %v331 = vrcp.pop %v327
    %v332 = vrcp.pop %v330
    %v333 = vmul.f32 %v322, %v331
    %v334 = vmul.f32 %v324, %v332
    %335 = vrot.lane.b32.xlu0 %v149, 96
    %v336 = vpop.permute.xlu0 %335
    %v339 = vsel %vm312, %v333, 0
    %341 = vmatprep.subr.mxu0 0.0
    %342 = vmatpush1.msra.mxu0 %v336
    %343 = vmatprep.subr.mxu0 0.0
    %344 = vmatpush1.msra.mxu0 0.0
    %345 = vmatprep.subr.mxu0 0.0
    %346 = vmatpush1.msra.mxu0 0.0
    %347 = vmatprep.subr.mxu0 0.0
    %348 = vmatpush1.msra.mxu0 0.0
    %349 = vmatprep.subr.mxu0 0.0
    %350 = vmatpush1.msra.mxu0 0.0
    %351 = vmatprep.subr.mxu0 0.0
    %352 = vmatpush1.msra.mxu0 0.0
    %353 = vmatprep.subr.mxu0 0.0
    %354 = vmatpush1.msra.mxu0 0.0
    %355 = vmatprep.subr.mxu0 0.0
    %356 = vmatpush1.msra.mxu0 0.0
    %357 = vmatprep.subr.mxu0 0.0
    %358 = vmatpush1.msra.mxu0 0.0
    %359 = vmatprep.subr.mxu0 0.0
    %360 = vmatpush1.msra.mxu0 0.0
    %361 = vmatprep.subr.mxu0 0.0
    %362 = vmatpush1.msra.mxu0 0.0
    %363 = vmatprep.subr.mxu0 0.0
    %364 = vmatpush1.msra.mxu0 0.0
    %365 = vmatprep.subr.mxu0 0.0
    %366 = vmatpush1.msra.mxu0 0.0
    %367 = vmatprep.subr.mxu0 0.0
    %368 = vmatpush1.msra.mxu0 0.0
    %369 = vmatprep.subr.mxu0 0.0
    %370 = vmatpush1.msra.mxu0 0.0
    %371 = vmatprep.subr.mxu0 0.0
    %372 = vmatpush1.msra.mxu0 0.0
    %373 = vmatprep.subr.mxu0 0.0
    %374 = vmatpush1.msra.mxu0 0.0
    %375 = vmatprep.subr.mxu0 0.0
    %376 = vmatpush1.msra.mxu0 0.0
    %377 = vmatprep.subr.mxu0 0.0
    %378 = vmatpush1.msra.mxu0 0.0
    %379 = vmatprep.subr.mxu0 0.0
    %380 = vmatpush1.msra.mxu0 0.0
    %381 = vmatprep.subr.mxu0 0.0
    %382 = vmatpush1.msra.mxu0 0.0
    %383 = vmatprep.subr.mxu0 0.0
    %384 = vmatpush1.msra.mxu0 0.0
    %385 = vmatprep.subr.mxu0 0.0
    %386 = vmatpush1.msra.mxu0 0.0
    %387 = vmatprep.subr.mxu0 0.0
    %388 = vmatpush1.msra.mxu0 0.0
    %389 = vmatprep.subr.mxu0 0.0
    %390 = vmatpush1.msra.mxu0 0.0
    %391 = vmatprep.subr.mxu0 0.0
    %392 = vmatpush1.msra.mxu0 0.0
    %393 = vmatprep.subr.mxu0 0.0
    %394 = vmatpush1.msra.mxu0 0.0
    %395 = vmatprep.subr.mxu0 0.0
    %396 = vmatpush1.msra.mxu0 0.0
    %397 = vmatprep.subr.mxu0 0.0
    %398 = vmatpush1.msra.mxu0 0.0
    %399 = vmatprep.subr.mxu0 0.0
    %400 = vmatpush1.msra.mxu0 0.0
    %401 = vmatprep.subr.mxu0 0.0
    %402 = vmatpush1.msra.mxu0 0.0
    %403 = vmatprep.subr.mxu0 0.0
    %404 = vmatpush1.msra.mxu0 0.0
    %405 = vmatprep.mubr.f32.mxu0 0.0
    %406 = vmatmul.mubr.f32.gmra.mrb[0].mxu0 %v339
    %v407 = vpop.f32.mrb[0].mxu0
    %v408 = vadd.f32 0.0, %v407
    %v409 = vpop.f32.mrb[0].mxu0
    %410 = vdwg.mxu0
    %411 = vrot.lane.b32.xlu0 %v154, 96
    %v412 = vpop.permute.xlu0 %411
    %v415 = vsel %vm312, %v334, 0
    %417 = vmatprep.subr.mxu0 0.0
    %418 = vmatpush1.msra.mxu0 %v412
    %419 = vmatprep.subr.mxu0 0.0
    %420 = vmatpush1.msra.mxu0 0.0
    %421 = vmatprep.subr.mxu0 0.0
    %422 = vmatpush1.msra.mxu0 0.0
    %423 = vmatprep.subr.mxu0 0.0
    %424 = vmatpush1.msra.mxu0 0.0
    %425 = vmatprep.subr.mxu0 0.0
    %426 = vmatpush1.msra.mxu0 0.0
    %427 = vmatprep.subr.mxu0 0.0
    %428 = vmatpush1.msra.mxu0 0.0
    %429 = vmatprep.subr.mxu0 0.0
    %430 = vmatpush1.msra.mxu0 0.0
    %431 = vmatprep.subr.mxu0 0.0
    %432 = vmatpush1.msra.mxu0 0.0
    %433 = vmatprep.subr.mxu0 0.0
    %434 = vmatpush1.msra.mxu0 0.0
    %435 = vmatprep.subr.mxu0 0.0
    %436 = vmatpush1.msra.mxu0 0.0
    %437 = vmatprep.subr.mxu0 0.0
    %438 = vmatpush1.msra.mxu0 0.0
    %439 = vmatprep.subr.mxu0 0.0
    %440 = vmatpush1.msra.mxu0 0.0
    %441 = vmatprep.subr.mxu0 0.0
    %442 = vmatpush1.msra.mxu0 0.0
    %443 = vmatprep.subr.mxu0 0.0
    %444 = vmatpush1.msra.mxu0 0.0
    %445 = vmatprep.subr.mxu0 0.0
    %446 = vmatpush1.msra.mxu0 0.0
    %447 = vmatprep.subr.mxu0 0.0
    %448 = vmatpush1.msra.mxu0 0.0
    %449 = vmatprep.subr.mxu0 0.0
    %450 = vmatpush1.msra.mxu0 0.0
    %451 = vmatprep.subr.mxu0 0.0
    %452 = vmatpush1.msra.mxu0 0.0
    %453 = vmatprep.subr.mxu0 0.0
    %454 = vmatpush1.msra.mxu0 0.0
    %455 = vmatprep.subr.mxu0 0.0
    %456 = vmatpush1.msra.mxu0 0.0
    %457 = vmatprep.subr.mxu0 0.0
    %458 = vmatpush1.msra.mxu0 0.0
    %459 = vmatprep.subr.mxu0 0.0
    %460 = vmatpush1.msra.mxu0 0.0
    %461 = vmatprep.subr.mxu0 0.0
    %462 = vmatpush1.msra.mxu0 0.0
    %463 = vmatprep.subr.mxu0 0.0
    %464 = vmatpush1.msra.mxu0 0.0
    %465 = vmatprep.subr.mxu0 0.0
    %466 = vmatpush1.msra.mxu0 0.0
    %467 = vmatprep.subr.mxu0 0.0
    %468 = vmatpush1.msra.mxu0 0.0
    %469 = vmatprep.subr.mxu0 0.0
    %470 = vmatpush1.msra.mxu0 0.0
    %471 = vmatprep.subr.mxu0 0.0
    %472 = vmatpush1.msra.mxu0 0.0
    %473 = vmatprep.subr.mxu0 0.0
    %474 = vmatpush1.msra.mxu0 0.0
    %475 = vmatprep.subr.mxu0 0.0
    %476 = vmatpush1.msra.mxu0 0.0
    %477 = vmatprep.subr.mxu0 0.0
    %478 = vmatpush1.msra.mxu0 0.0
    %479 = vmatprep.subr.mxu0 0.0
    %480 = vmatpush1.msra.mxu0 0.0
    %481 = vmatprep.mubr.f32.mxu0 0.0
    %482 = vmatmul.mubr.f32.gmra.mrb[0].mxu0 %v415
    %v483 = vpop.f32.mrb[0].mxu0
    %v484 = vadd.f32 0.0, %v483
    %v485 = vpop.f32.mrb[0].mxu0
    %486 = vdwg.mxu0
    %s487 = scalar_lea.vmem [#allocation5], 32
    %v488 = vld [vmem:[%s487] sm:$0xff]
    %v489 = vld [vmem:[%s487 + $0x8] sm:$0xff]
    %v490 = vld [vmem:[%s487 + $0x10] sm:$0xff]
    %v491 = vld [vmem:[%s487 + $0x18] sm:$0xff]
    %s492 = scalar_lea.vmem %s2, 1
    %v493 = vld [vmem:[%s492] sm:$0x1]
    %v495 = vlaneseq
    %v496 = vshrl.u32 %v495, 7
    %v497 = vsub.s32 0, %v496
    %v498 = vrot.slane %v493, %v497
    %500 = vmatprep.subr.mxu0 0.0
    %501 = vmatpush1.msra.mxu0 %v488
    %502 = vmatprep.subr.mxu0 0.0
    %503 = vmatpush1.msra.mxu0 %v489
    %504 = vmatprep.subr.mxu0 0.0
    %505 = vmatpush1.msra.mxu0 %v490
    %506 = vmatprep.subr.mxu0 0.0
    %507 = vmatpush1.msra.mxu0 %v491
    %508 = vmatprep.subr.mxu0 0.0
    %509 = vmatpush1.msra.mxu0 0.0
    %510 = vmatprep.subr.mxu0 0.0
    %511 = vmatpush1.msra.mxu0 0.0
    %512 = vmatprep.subr.mxu0 0.0
    %513 = vmatpush1.msra.mxu0 0.0
    %514 = vmatprep.subr.mxu0 0.0
    %515 = vmatpush1.msra.mxu0 0.0
    %516 = vmatprep.subr.mxu0 0.0
    %517 = vmatpush1.msra.mxu0 0.0
    %518 = vmatprep.subr.mxu0 0.0
    %519 = vmatpush1.msra.mxu0 0.0
    %520 = vmatprep.subr.mxu0 0.0
    %521 = vmatpush1.msra.mxu0 0.0
    %522 = vmatprep.subr.mxu0 0.0
    %523 = vmatpush1.msra.mxu0 0.0
    %524 = vmatprep.subr.mxu0 0.0
    %525 = vmatpush1.msra.mxu0 0.0
    %526 = vmatprep.subr.mxu0 0.0
    %527 = vmatpush1.msra.mxu0 0.0
    %528 = vmatprep.subr.mxu0 0.0
    %529 = vmatpush1.msra.mxu0 0.0
    %530 = vmatprep.subr.mxu0 0.0
    %531 = vmatpush1.msra.mxu0 0.0
    %532 = vmatprep.subr.mxu0 0.0
    %533 = vmatpush1.msra.mxu0 0.0
    %534 = vmatprep.subr.mxu0 0.0
    %535 = vmatpush1.msra.mxu0 0.0
    %536 = vmatprep.subr.mxu0 0.0
    %537 = vmatpush1.msra.mxu0 0.0
    %538 = vmatprep.subr.mxu0 0.0
    %539 = vmatpush1.msra.mxu0 0.0
    %540 = vmatprep.subr.mxu0 0.0
    %541 = vmatpush1.msra.mxu0 0.0
    %542 = vmatprep.subr.mxu0 0.0
    %543 = vmatpush1.msra.mxu0 0.0
    %544 = vmatprep.subr.mxu0 0.0
    %545 = vmatpush1.msra.mxu0 0.0
    %546 = vmatprep.subr.mxu0 0.0
    %547 = vmatpush1.msra.mxu0 0.0
    %548 = vmatprep.subr.mxu0 0.0
    %549 = vmatpush1.msra.mxu0 0.0
    %550 = vmatprep.subr.mxu0 0.0
    %551 = vmatpush1.msra.mxu0 0.0
    %552 = vmatprep.subr.mxu0 0.0
    %553 = vmatpush1.msra.mxu0 0.0
    %554 = vmatprep.subr.mxu0 0.0
    %555 = vmatpush1.msra.mxu0 0.0
    %556 = vmatprep.subr.mxu0 0.0
    %557 = vmatpush1.msra.mxu0 0.0
    %558 = vmatprep.subr.mxu0 0.0
    %559 = vmatpush1.msra.mxu0 0.0
    %560 = vmatprep.subr.mxu0 0.0
    %561 = vmatpush1.msra.mxu0 0.0
    %562 = vmatprep.subr.mxu0 0.0
    %563 = vmatpush1.msra.mxu0 0.0
    %564 = vmatprep.mubr.f32.mxu0 0.0
    %565 = vmatmul.mubr.f32.gmra.mrb[0].mxu0 %v77
    %v566 = vpop.f32.mrb[0].mxu0
    %v567 = vadd.f32 %v498, %v566
    %v568 = vpop.f32.mrb[0].mxu0
    %569 = vmatprep.mubr.f32.mxu0 0.0
    %570 = vmatmul.mubr.f32.gmra.mrb[0].mxu0 %v80
    %v571 = vpop.f32.mrb[0].mxu0
    %v572 = vadd.f32 %v498, %v571
    %v573 = vpop.f32.mrb[0].mxu0
    %574 = vdwg.mxu0
    %576 = vrot.lane.b32.xlu0 %v567, 112
    %v577 = vpop.permute.xlu0 %576
    %v578 = vsel %vm160, %v567, 0
    %v580 = vsel %vm160, %v577, 0
    %582 = vmatprep.subr.mxu0 0.0
    %583 = vmatpush1.xpose.msra.mxu0 %v580
    %584 = vmatprep.subr.mxu0 0.0
    %585 = vmatpush1.xpose.msra.mxu0 0.0
    %586 = vmatprep.subr.mxu0 0.0
    %587 = vmatpush1.xpose.msra.mxu0 0.0
    %588 = vmatprep.subr.mxu0 0.0
    %589 = vmatpush1.xpose.msra.mxu0 0.0
    %590 = vmatprep.subr.mxu0 0.0
    %591 = vmatpush1.xpose.msra.mxu0 0.0
    %592 = vmatprep.subr.mxu0 0.0
    %593 = vmatpush1.xpose.msra.mxu0 0.0
    %594 = vmatprep.subr.mxu0 0.0
    %595 = vmatpush1.xpose.msra.mxu0 0.0
    %596 = vmatprep.subr.mxu0 0.0
    %597 = vmatpush1.xpose.msra.mxu0 0.0
    %598 = vmatprep.subr.mxu0 0.0
    %599 = vmatpush1.xpose.msra.mxu0 0.0
    %600 = vmatprep.subr.mxu0 0.0
    %601 = vmatpush1.xpose.msra.mxu0 0.0
    %602 = vmatprep.subr.mxu0 0.0
    %603 = vmatpush1.xpose.msra.mxu0 0.0
    %604 = vmatprep.subr.mxu0 0.0
    %605 = vmatpush1.xpose.msra.mxu0 0.0
    %606 = vmatprep.subr.mxu0 0.0
    %607 = vmatpush1.xpose.msra.mxu0 0.0
    %608 = vmatprep.subr.mxu0 0.0
    %609 = vmatpush1.xpose.msra.mxu0 0.0
    %610 = vmatprep.subr.mxu0 0.0
    %611 = vmatpush1.xpose.msra.mxu0 0.0
    %612 = vmatprep.subr.mxu0 0.0
    %613 = vmatpush1.xpose.msra.mxu0 0.0
    %614 = vmatprep.subr.mxu0 0.0
    %615 = vmatpush1.xpose.msra.mxu0 0.0
    %616 = vmatprep.subr.mxu0 0.0
    %617 = vmatpush1.xpose.msra.mxu0 0.0
    %618 = vmatprep.subr.mxu0 0.0
    %619 = vmatpush1.xpose.msra.mxu0 0.0
    %620 = vmatprep.subr.mxu0 0.0
    %621 = vmatpush1.xpose.msra.mxu0 0.0
    %622 = vmatprep.subr.mxu0 0.0
    %623 = vmatpush1.xpose.msra.mxu0 0.0
    %624 = vmatprep.subr.mxu0 0.0
    %625 = vmatpush1.xpose.msra.mxu0 0.0
    %626 = vmatprep.subr.mxu0 0.0
    %627 = vmatpush1.xpose.msra.mxu0 0.0
    %628 = vmatprep.subr.mxu0 0.0
    %629 = vmatpush1.xpose.msra.mxu0 0.0
    %630 = vmatprep.subr.mxu0 0.0
    %631 = vmatpush1.xpose.msra.mxu0 0.0
    %632 = vmatprep.subr.mxu0 0.0
    %633 = vmatpush1.xpose.msra.mxu0 0.0
    %634 = vmatprep.subr.mxu0 0.0
    %635 = vmatpush1.xpose.msra.mxu0 0.0
    %636 = vmatprep.subr.mxu0 0.0
    %637 = vmatpush1.xpose.msra.mxu0 0.0
    %638 = vmatprep.subr.mxu0 0.0
    %639 = vmatpush1.xpose.msra.mxu0 0.0
    %640 = vmatprep.subr.mxu0 0.0
    %641 = vmatpush1.xpose.msra.mxu0 0.0
    %642 = vmatprep.subr.mxu0 0.0
    %643 = vmatpush1.xpose.msra.mxu0 0.0
    %644 = vmatprep.subr.mxu0 0.0
    %645 = vmatpush1.xpose.msra.mxu0 0.0
    %646 = vmatprep.mubr.f32.mxu0 0.0
    %647 = vmatmul.mubr.f32.gmra.mrb[0].mxu0 %v578
    %v648 = vpop.f32.mrb[0].mxu0
    %v649 = vadd.f32 0.0, %v648
    %v650 = vpop.f32.mrb[0].mxu0
    %651 = vdwg.mxu0
    %653 = vrot.lane.b32.xlu0 %v572, 112
    %v654 = vpop.permute.xlu0 %653
    %v655 = vsel %vm160, %v572, 0
    %v657 = vsel %vm160, %v654, 0
    %659 = vmatprep.subr.mxu0 0.0
    %660 = vmatpush1.xpose.msra.mxu0 %v657
    %661 = vmatprep.subr.mxu0 0.0
    %662 = vmatpush1.xpose.msra.mxu0 0.0
    %663 = vmatprep.subr.mxu0 0.0
    %664 = vmatpush1.xpose.msra.mxu0 0.0
    %665 = vmatprep.subr.mxu0 0.0
    %666 = vmatpush1.xpose.msra.mxu0 0.0
    %667 = vmatprep.subr.mxu0 0.0
    %668 = vmatpush1.xpose.msra.mxu0 0.0
    %669 = vmatprep.subr.mxu0 0.0
    %670 = vmatpush1.xpose.msra.mxu0 0.0
    %671 = vmatprep.subr.mxu0 0.0
    %672 = vmatpush1.xpose.msra.mxu0 0.0
    %673 = vmatprep.subr.mxu0 0.0
    %674 = vmatpush1.xpose.msra.mxu0 0.0
    %675 = vmatprep.subr.mxu0 0.0
    %676 = vmatpush1.xpose.msra.mxu0 0.0
    %677 = vmatprep.subr.mxu0 0.0
    %678 = vmatpush1.xpose.msra.mxu0 0.0
    %679 = vmatprep.subr.mxu0 0.0
    %680 = vmatpush1.xpose.msra.mxu0 0.0
    %681 = vmatprep.subr.mxu0 0.0
    %682 = vmatpush1.xpose.msra.mxu0 0.0
    %683 = vmatprep.subr.mxu0 0.0
    %684 = vmatpush1.xpose.msra.mxu0 0.0
    %685 = vmatprep.subr.mxu0 0.0
    %686 = vmatpush1.xpose.msra.mxu0 0.0
    %687 = vmatprep.subr.mxu0 0.0
    %688 = vmatpush1.xpose.msra.mxu0 0.0
    %689 = vmatprep.subr.mxu0 0.0
    %690 = vmatpush1.xpose.msra.mxu0 0.0
    %691 = vmatprep.subr.mxu0 0.0
    %692 = vmatpush1.xpose.msra.mxu0 0.0
    %693 = vmatprep.subr.mxu0 0.0
    %694 = vmatpush1.xpose.msra.mxu0 0.0
    %695 = vmatprep.subr.mxu0 0.0
    %696 = vmatpush1.xpose.msra.mxu0 0.0
    %697 = vmatprep.subr.mxu0 0.0
    %698 = vmatpush1.xpose.msra.mxu0 0.0
    %699 = vmatprep.subr.mxu0 0.0
    %700 = vmatpush1.xpose.msra.mxu0 0.0
    %701 = vmatprep.subr.mxu0 0.0
    %702 = vmatpush1.xpose.msra.mxu0 0.0
    %703 = vmatprep.subr.mxu0 0.0
    %704 = vmatpush1.xpose.msra.mxu0 0.0
    %705 = vmatprep.subr.mxu0 0.0
    %706 = vmatpush1.xpose.msra.mxu0 0.0
    %707 = vmatprep.subr.mxu0 0.0
    %708 = vmatpush1.xpose.msra.mxu0 0.0
    %709 = vmatprep.subr.mxu0 0.0
    %710 = vmatpush1.xpose.msra.mxu0 0.0
    %711 = vmatprep.subr.mxu0 0.0
    %712 = vmatpush1.xpose.msra.mxu0 0.0
    %713 = vmatprep.subr.mxu0 0.0
    %714 = vmatpush1.xpose.msra.mxu0 0.0
    %715 = vmatprep.subr.mxu0 0.0
    %716 = vmatpush1.xpose.msra.mxu0 0.0
    %717 = vmatprep.subr.mxu0 0.0
    %718 = vmatpush1.xpose.msra.mxu0 0.0
    %719 = vmatprep.subr.mxu0 0.0
    %720 = vmatpush1.xpose.msra.mxu0 0.0
    %721 = vmatprep.subr.mxu0 0.0
    %722 = vmatpush1.xpose.msra.mxu0 0.0
    %723 = vmatprep.mubr.f32.mxu0 0.0
    %724 = vmatmul.mubr.f32.gmra.mrb[0].mxu0 %v655
    %v725 = vpop.f32.mrb[0].mxu0
    %v726 = vadd.f32 0.0, %v725
    %v727 = vpop.f32.mrb[0].mxu0
    %728 = vdwg.mxu0
    %v729 = vsel %vm312, %v649, -inf
    %730 = vmax.xlane.f32.xlu0 %v729
    %v731 = vpop.xlane.xlu0 %730
    %v732 = vsel %vm312, %v726, -inf
    %733 = vmax.xlane.f32.xlu0 %v732
    %v734 = vpop.xlane.xlu0 %733
    %v735 = vsub.f32 %v649, %v731
    %v736 = vsub.f32 %v726, %v734
    %v737 = vmul.f32 %v735, 1.442695
    %v738 = vpow.pop %v737
    %v739 = vmul.f32 %v736, 1.442695
    %v740 = vpow.pop %v739
    %v741 = vsel %vm312, %v738, 0.0
    %742 = vadd.xlane.f32.xlu0 %v741
    %v743 = vpop.xlane.xlu0 %742
    %v744 = vsel %vm312, %v740, 0.0
    %745 = vadd.xlane.f32.xlu0 %v744
    %v746 = vpop.xlane.xlu0 %745
    %v747 = vrcp.pop %v743
    %v748 = vrcp.pop %v746
    %v749 = vmul.f32 %v738, %v747
    %v750 = vmul.f32 %v740, %v748
    %751 = vrot.lane.b32.xlu0 %v567, 96
    %v752 = vpop.permute.xlu0 %751
    %v755 = vsel %vm312, %v749, 0
    %757 = vmatprep.subr.mxu0 0.0
    %758 = vmatpush1.msra.mxu0 %v752
    %759 = vmatprep.subr.mxu0 0.0
    %760 = vmatpush1.msra.mxu0 0.0
    %761 = vmatprep.subr.mxu0 0.0
    %762 = vmatpush1.msra.mxu0 0.0
    %763 = vmatprep.subr.mxu0 0.0
    %764 = vmatpush1.msra.mxu0 0.0
    %765 = vmatprep.subr.mxu0 0.0
    %766 = vmatpush1.msra.mxu0 0.0
    %767 = vmatprep.subr.mxu0 0.0
    %768 = vmatpush1.msra.mxu0 0.0
    %769 = vmatprep.subr.mxu0 0.0
    %770 = vmatpush1.msra.mxu0 0.0
    %771 = vmatprep.subr.mxu0 0.0
    %772 = vmatpush1.msra.mxu0 0.0
    %773 = vmatprep.subr.mxu0 0.0
    %774 = vmatpush1.msra.mxu0 0.0
    %775 = vmatprep.subr.mxu0 0.0
    %776 = vmatpush1.msra.mxu0 0.0
    %777 = vmatprep.subr.mxu0 0.0
    %778 = vmatpush1.msra.mxu0 0.0
    %779 = vmatprep.subr.mxu0 0.0
    %780 = vmatpush1.msra.mxu0 0.0
    %781 = vmatprep.subr.mxu0 0.0
    %782 = vmatpush1.msra.mxu0 0.0
    %783 = vmatprep.subr.mxu0 0.0
    %784 = vmatpush1.msra.mxu0 0.0
    %785 = vmatprep.subr.mxu0 0.0
    %786 = vmatpush1.msra.mxu0 0.0
    %787 = vmatprep.subr.mxu0 0.0
    %788 = vmatpush1.msra.mxu0 0.0
    %789 = vmatprep.subr.mxu0 0.0
    %790 = vmatpush1.msra.mxu0 0.0
    %791 = vmatprep.subr.mxu0 0.0
    %792 = vmatpush1.msra.mxu0 0.0
    %793 = vmatprep.subr.mxu0 0.0
    %794 = vmatpush1.msra.mxu0 0.0
    %795 = vmatprep.subr.mxu0 0.0
    %796 = vmatpush1.msra.mxu0 0.0
    %797 = vmatprep.subr.mxu0 0.0
    %798 = vmatpush1.msra.mxu0 0.0
    %799 = vmatprep.subr.mxu0 0.0
    %800 = vmatpush1.msra.mxu0 0.0
    %801 = vmatprep.subr.mxu0 0.0
    %802 = vmatpush1.msra.mxu0 0.0
    %803 = vmatprep.subr.mxu0 0.0
    %804 = vmatpush1.msra.mxu0 0.0
    %805 = vmatprep.subr.mxu0 0.0
    %806 = vmatpush1.msra.mxu0 0.0
    %807 = vmatprep.subr.mxu0 0.0
    %808 = vmatpush1.msra.mxu0 0.0
    %809 = vmatprep.subr.mxu0 0.0
    %810 = vmatpush1.msra.mxu0 0.0
    %811 = vmatprep.subr.mxu0 0.0
    %812 = vmatpush1.msra.mxu0 0.0
    %813 = vmatprep.subr.mxu0 0.0
    %814 = vmatpush1.msra.mxu0 0.0
    %815 = vmatprep.subr.mxu0 0.0
    %816 = vmatpush1.msra.mxu0 0.0
    %817 = vmatprep.subr.mxu0 0.0
    %818 = vmatpush1.msra.mxu0 0.0
    %819 = vmatprep.subr.mxu0 0.0
    %820 = vmatpush1.msra.mxu0 0.0
    %821 = vmatprep.mubr.f32.mxu0 0.0
    %822 = vmatmul.mubr.f32.gmra.mrb[0].mxu0 %v755
    %v823 = vpop.f32.mrb[0].mxu0
    %v824 = vadd.f32 0.0, %v823
    %v825 = vpop.f32.mrb[0].mxu0
    %826 = vdwg.mxu0
    %827 = vrot.lane.b32.xlu0 %v572, 96
    %v828 = vpop.permute.xlu0 %827
    %v831 = vsel %vm312, %v750, 0
    %833 = vmatprep.subr.mxu0 0.0
    %834 = vmatpush1.msra.mxu0 %v828
    %835 = vmatprep.subr.mxu0 0.0
    %836 = vmatpush1.msra.mxu0 0.0
    %837 = vmatprep.subr.mxu0 0.0
    %838 = vmatpush1.msra.mxu0 0.0
    %839 = vmatprep.subr.mxu0 0.0
    %840 = vmatpush1.msra.mxu0 0.0
    %841 = vmatprep.subr.mxu0 0.0
    %842 = vmatpush1.msra.mxu0 0.0
    %843 = vmatprep.subr.mxu0 0.0
    %844 = vmatpush1.msra.mxu0 0.0
    %845 = vmatprep.subr.mxu0 0.0
    %846 = vmatpush1.msra.mxu0 0.0
    %847 = vmatprep.subr.mxu0 0.0
    %848 = vmatpush1.msra.mxu0 0.0
    %849 = vmatprep.subr.mxu0 0.0
    %850 = vmatpush1.msra.mxu0 0.0
    %851 = vmatprep.subr.mxu0 0.0
    %852 = vmatpush1.msra.mxu0 0.0
    %853 = vmatprep.subr.mxu0 0.0
    %854 = vmatpush1.msra.mxu0 0.0
    %855 = vmatprep.subr.mxu0 0.0
    %856 = vmatpush1.msra.mxu0 0.0
    %857 = vmatprep.subr.mxu0 0.0
    %858 = vmatpush1.msra.mxu0 0.0
    %859 = vmatprep.subr.mxu0 0.0
    %860 = vmatpush1.msra.mxu0 0.0
    %861 = vmatprep.subr.mxu0 0.0
    %862 = vmatpush1.msra.mxu0 0.0
    %863 = vmatprep.subr.mxu0 0.0
    %864 = vmatpush1.msra.mxu0 0.0
    %865 = vmatprep.subr.mxu0 0.0
    %866 = vmatpush1.msra.mxu0 0.0
    %867 = vmatprep.subr.mxu0 0.0
    %868 = vmatpush1.msra.mxu0 0.0
    %869 = vmatprep.subr.mxu0 0.0
    %870 = vmatpush1.msra.mxu0 0.0
    %871 = vmatprep.subr.mxu0 0.0
    %872 = vmatpush1.msra.mxu0 0.0
    %873 = vmatprep.subr.mxu0 0.0
    %874 = vmatpush1.msra.mxu0 0.0
    %875 = vmatprep.subr.mxu0 0.0
    %876 = vmatpush1.msra.mxu0 0.0
    %877 = vmatprep.subr.mxu0 0.0
    %878 = vmatpush1.msra.mxu0 0.0
    %879 = vmatprep.subr.mxu0 0.0
    %880 = vmatpush1.msra.mxu0 0.0
    %881 = vmatprep.subr.mxu0 0.0
    %882 = vmatpush1.msra.mxu0 0.0
    %883 = vmatprep.subr.mxu0 0.0
    %884 = vmatpush1.msra.mxu0 0.0
    %885 = vmatprep.subr.mxu0 0.0
    %886 = vmatpush1.msra.mxu0 0.0
    %887 = vmatprep.subr.mxu0 0.0
    %888 = vmatpush1.msra.mxu0 0.0
    %889 = vmatprep.subr.mxu0 0.0
    %890 = vmatpush1.msra.mxu0 0.0
    %891 = vmatprep.subr.mxu0 0.0
    %892 = vmatpush1.msra.mxu0 0.0
    %893 = vmatprep.subr.mxu0 0.0
    %894 = vmatpush1.msra.mxu0 0.0
    %895 = vmatprep.subr.mxu0 0.0
    %896 = vmatpush1.msra.mxu0 0.0
    %897 = vmatprep.mubr.f32.mxu0 0.0
    %898 = vmatmul.mubr.f32.gmra.mrb[0].mxu0 %v831
    %v899 = vpop.f32.mrb[0].mxu0
    %v900 = vadd.f32 0.0, %v899
    %v901 = vpop.f32.mrb[0].mxu0
    %902 = vdwg.mxu0
    %905 = vrot.lane.b32.xlu0 %v824, 16
    %v906 = vpop.permute.xlu0 %905
    %907 = vrot.lane.b32.xlu0 %v900, 16
    %v908 = vpop.permute.xlu0 %907
    %v911 = vsel %vm160, %v408, %v906
    %v912 = vsel %vm160, %v484, %v908
    %v913 = vld [vmem:[#allocation7] sm:$0xff]
    %v914 = vld [vmem:[#allocation7 + $0x8] sm:$0xff]
    %v915 = vld [vmem:[#allocation7 + $0x10] sm:$0xff]
    %v916 = vld [vmem:[#allocation7 + $0x18] sm:$0xff]
    %v917 = vld [vmem:[%s4] sm:$0x1]
    %v919 = vlaneseq
    %v920 = vshrl.u32 %v919, 7
    %v921 = vsub.s32 0, %v920
    %v922 = vrot.slane %v917, %v921
    %v925 = vsel %vm75, %v911, 0
    %v928 = vsel %vm75, %v912, 0
    %930 = vmatprep.subr.mxu0 0.0
    %931 = vmatpush1.msra.mxu0 %v913
    %932 = vmatprep.subr.mxu0 0.0
    %933 = vmatpush1.msra.mxu0 %v914
    %934 = vmatprep.subr.mxu0 0.0
    %935 = vmatpush1.msra.mxu0 %v915
    %936 = vmatprep.subr.mxu0 0.0
    %937 = vmatpush1.msra.mxu0 %v916
    %938 = vmatprep.subr.mxu0 0.0
    %939 = vmatpush1.msra.mxu0 0.0
    %940 = vmatprep.subr.mxu0 0.0
    %941 = vmatpush1.msra.mxu0 0.0
    %942 = vmatprep.subr.mxu0 0.0
    %943 = vmatpush1.msra.mxu0 0.0
    %944 = vmatprep.subr.mxu0 0.0
    %945 = vmatpush1.msra.mxu0 0.0
    %946 = vmatprep.subr.mxu0 0.0
    %947 = vmatpush1.msra.mxu0 0.0
    %948 = vmatprep.subr.mxu0 0.0
    %949 = vmatpush1.msra.mxu0 0.0
    %950 = vmatprep.subr.mxu0 0.0
    %951 = vmatpush1.msra.mxu0 0.0
    %952 = vmatprep.subr.mxu0 0.0
    %953 = vmatpush1.msra.mxu0 0.0
    %954 = vmatprep.subr.mxu0 0.0
    %955 = vmatpush1.msra.mxu0 0.0
    %956 = vmatprep.subr.mxu0 0.0
    %957 = vmatpush1.msra.mxu0 0.0
    %958 = vmatprep.subr.mxu0 0.0
    %959 = vmatpush1.msra.mxu0 0.0
    %960 = vmatprep.subr.mxu0 0.0
    %961 = vmatpush1.msra.mxu0 0.0
    %962 = vmatprep.subr.mxu0 0.0
    %963 = vmatpush1.msra.mxu0 0.0
    %964 = vmatprep.subr.mxu0 0.0
    %965 = vmatpush1.msra.mxu0 0.0
    %966 = vmatprep.subr.mxu0 0.0
    %967 = vmatpush1.msra.mxu0 0.0
    %968 = vmatprep.subr.mxu0 0.0
    %969 = vmatpush1.msra.mxu0 0.0
    %970 = vmatprep.subr.mxu0 0.0
    %971 = vmatpush1.msra.mxu0 0.0
    %972 = vmatprep.subr.mxu0 0.0
    %973 = vmatpush1.msra.mxu0 0.0
    %974 = vmatprep.subr.mxu0 0.0
    %975 = vmatpush1.msra.mxu0 0.0
    %976 = vmatprep.subr.mxu0 0.0
    %977 = vmatpush1.msra.mxu0 0.0
    %978 = vmatprep.subr.mxu0 0.0
    %979 = vmatpush1.msra.mxu0 0.0
    %980 = vmatprep.subr.mxu0 0.0
    %981 = vmatpush1.msra.mxu0 0.0
    %982 = vmatprep.subr.mxu0 0.0
    %983 = vmatpush1.msra.mxu0 0.0
    %984 = vmatprep.subr.mxu0 0.0
    %985 = vmatpush1.msra.mxu0 0.0
    %986 = vmatprep.subr.mxu0 0.0
    %987 = vmatpush1.msra.mxu0 0.0
    %988 = vmatprep.subr.mxu0 0.0
    %989 = vmatpush1.msra.mxu0 0.0
    %990 = vmatprep.subr.mxu0 0.0
    %991 = vmatpush1.msra.mxu0 0.0
    %992 = vmatprep.subr.mxu0 0.0
    %993 = vmatpush1.msra.mxu0 0.0
    %994 = vmatprep.mubr.f32.mxu0 0.0
    %995 = vmatmul.mubr.f32.gmra.mrb[0].mxu0 %v925
    %v996 = vpop.f32.mrb[0].mxu0
    %v997 = vadd.f32 %v922, %v996
    %v998 = vpop.f32.mrb[0].mxu0
    %999 = vmatprep.mubr.f32.mxu0 0.0
    %1000 = vmatmul.mubr.f32.gmra.mrb[0].mxu0 %v928
    %v1001 = vpop.f32.mrb[0].mxu0
    %v1002 = vadd.f32 %v922, %v1001
    %v1003 = vpop.f32.mrb[0].mxu0
    %1004 = vdwg.mxu0
    %1005 = vst.msk [vmem:[#allocation8] sm:$0xff] %vm75, %v997
    %1006 = vst.msk [vmem:[#allocation8 + $0x8] sm:$0xff] %vm75, %v1002
    // Predicated region
    $region34: #{tpu_custom_call.1} parent=1 // pred_check
      _
    $region35: #{tpu_custom_call.1} parent=1 // pred_check_branch
      %1008 = sbr.rel (0) target = $region37
    $region36: #{tpu_custom_call.1} parent=1 // pred_region
      %s1010 = ssub.s32 256, 256
      %1011 = vsyncadd [#allocation4], %s1010
      %s1012 = sshll.u32 [#allocation8], 4
      %s1013 = int_to_ptr.vmem [resolvable:$true] %s1012
      %1018 = dma.vmem_to_hbm [thread:$0]  %s1013, 256, %s5, [#allocation4], 128, 128, 8
    $region37: #{tpu_custom_call.1} parent=1 // pred_fallthru
      _
    // Predicated region
    $region38: #{tpu_custom_call.1} parent=1 // pred_check
      _
    $region39: #{tpu_custom_call.1} parent=1 // pred_check_branch
      %1020 = sbr.rel (0) target = $region41
    $region40: #{tpu_custom_call.1} parent=1 // pred_region
      %1021 = dma.done [#allocation4], 256
    $region41: #{tpu_custom_call.1} parent=1 // pred_fallthru
      _
    %1022 = vsyncpa [#allocation3], 1
    %1023 = vsyncpa [#allocation6], 1
    %1024 = vsyncpa [#allocation4], 1

</llo_original>
